<compile_context>
chip_gen: v7x
topology: tpu7x:2x2x1
jax: 0.10.0
libtpu: 0.0.40
codegen_flags: <defaults>
</compile_context>

<pallas_src>
import jax
import jax.numpy as jnp
from jax.experimental import pallas as pl
from jax.experimental.pallas import tpu as pltpu

LN_EPS = 1e-5  # torch.nn.LayerNorm default


def task_encoder_kernel(x_ref, w1_ref, b1_ref, w2_ref, b2_ref, g_ref, beta_ref, o_ref):
    # x_ref:  (TILE_R, obs_dim)          possibly bf16
    # w1_ref: (obs_dim, hidden)          same dtype as x (transposed torch weight)
    # b1_ref: (1, hidden)                f32
    # w2_ref: (hidden, embed)            same dtype as x
    # b2_ref, g_ref, beta_ref: (1, embed) f32
    # o_ref:  (TILE_R, embed)
    x = x_ref[...]

    # Linear 1 + ReLU (MXU, f32 accumulation)
    h = jnp.dot(x, w1_ref[...], preferred_element_type=jnp.float32)
    h = h + b1_ref[...].astype(jnp.float32)
    h = jnp.maximum(h, 0.0)

    # Linear 2 (feed MXU in the weight dtype, accumulate in f32)
    y = jnp.dot(h.astype(w2_ref.dtype), w2_ref[...], preferred_element_type=jnp.float32)
    y = y + b2_ref[...].astype(jnp.float32)

    # LayerNorm over last dim (biased variance, eps inside rsqrt) — all f32.
    mean = jnp.mean(y, axis=-1, keepdims=True)
    centered = y - mean
    var = jnp.mean(centered * centered, axis=-1, keepdims=True)
    y_norm = centered * jax.lax.rsqrt(var + LN_EPS)

    out = y_norm * g_ref[...].astype(jnp.float32) + beta_ref[...].astype(jnp.float32)
    o_ref[...] = out.astype(o_ref.dtype)


def task_encoder_forward(task_obs, params, *, tile_rows=1024,
                         compute_dtype=jnp.float32, out_dtype=jnp.float32):
    """task_obs: (..., obs_dim). Returns (..., embed_dim) in out_dtype.

    compute_dtype=jnp.bfloat16 halves HBM traffic on v6e/v7x (LayerNorm math
    stays f32 inside the kernel); the default f32 matches the torch reference
    to ~1e-4.
    """
    w1t, b1, w2t, b2, gamma, beta = params
    obs_dim = task_obs.shape[-1]
    hidden = w1t.shape[-1]
    embed_dim = w2t.shape[-1]
    lead = task_obs.shape[:-1]

    x2d = task_obs.reshape(-1, obs_dim).astype(compute_dtype)
    w1c = w1t.astype(compute_dtype)
    w2c = w2t.astype(compute_dtype)
    rows = x2d.shape[0]

    # Row tile: multiple of 8 (f32 sublanes), capped by tile_rows; pad rows so
    # every grid step sees a full, unmasked tile.
    tile_r = min(int(tile_rows), pl.cdiv(rows, 8) * 8)
    rows_pad = pl.cdiv(rows, tile_r) * tile_r
    if rows_pad != rows:
        x2d = jnp.pad(x2d, ((0, rows_pad - rows), (0, 0)))

    grid = (rows_pad // tile_r,)

    in_bytes = rows_pad * obs_dim * jnp.dtype(compute_dtype).itemsize
    w_bytes = (w1c.size + w2c.size) * jnp.dtype(compute_dtype).itemsize \
        + (b1.size + b2.size + gamma.size + beta.size) * 4
    out_bytes = rows_pad * embed_dim * jnp.dtype(out_dtype).itemsize
    cost = pl.CostEstimate(
        flops=2 * rows_pad * (obs_dim * hidden + hidden * embed_dim),
        transcendentals=rows_pad,  # one rsqrt per row
        bytes_accessed=in_bytes + w_bytes + out_bytes,
    )

    out = pl.pallas_call(
        task_encoder_kernel,
        out_shape=jax.ShapeDtypeStruct((rows_pad, embed_dim), out_dtype),
        grid=grid,
        in_specs=[
            pl.BlockSpec((tile_r, obs_dim), lambda i: (i, 0)),      # x: tiled rows
            pl.BlockSpec((obs_dim, hidden), lambda i: (0, 0)),      # w1^T: resident
            pl.BlockSpec((1, hidden), lambda i: (0, 0)),            # b1
            pl.BlockSpec((hidden, embed_dim), lambda i: (0, 0)),    # w2^T
            pl.BlockSpec((1, embed_dim), lambda i: (0, 0)),         # b2
            pl.BlockSpec((1, embed_dim), lambda i: (0, 0)),         # gamma
            pl.BlockSpec((1, embed_dim), lambda i: (0, 0)),         # beta
        ],
        out_specs=pl.BlockSpec((tile_r, embed_dim), lambda i: (i, 0)),
        compiler_params=pltpu.CompilerParams(
            dimension_semantics=("parallel",),  # megacore sharding on v7x
        ),
        cost_estimate=cost,
    )(x2d, w1c, b1, w2c, b2, gamma, beta)

    if rows_pad != rows:
        out = out[:rows]
    return out.reshape(*lead, embed_dim)


def init_params(key, obs_dim_per_task, embed_dim):
    """Deterministic synthetic params with the same shapes as the torch module."""
    hidden = embed_dim // 2
    k1, k2, k3, k4 = jax.random.split(key, 4)
    # torch Linear weights are (out, in); we store the transposed (in, out) view.
    w1t = jax.random.normal(k1, (obs_dim_per_task, hidden), jnp.float32) * 0.1
    b1 = jax.random.normal(k2, (1, hidden), jnp.float32) * 0.01
    w2t = jax.random.normal(k3, (hidden, embed_dim), jnp.float32) * 0.1
    b2 = jax.random.normal(k4, (1, embed_dim), jnp.float32) * 0.01
    gamma = jnp.ones((1, embed_dim), jnp.float32)   # LayerNorm weight
    beta = jnp.zeros((1, embed_dim), jnp.float32)   # LayerNorm bias
    return (w1t, b1, w2t, b2, gamma, beta)


def reference_forward(task_obs, params):
    """Pure-JAX reference mirroring the torch forward."""
    w1t, b1, w2t, b2, gamma, beta = params
    h = jnp.maximum(task_obs @ w1t + b1[0], 0.0)
    y = h @ w2t + b2[0]
    mean = jnp.mean(y, axis=-1, keepdims=True)
    var = jnp.mean((y - mean) ** 2, axis=-1, keepdims=True)
    return (y - mean) * jax.lax.rsqrt(var + LN_EPS) * gamma[0] + beta[0]


if __name__ == "__main__":
    obs_dim_per_task = 16
    embed_dim = 32
    batch, num_tasks = 2, 8

    key = jax.random.PRNGKey(0)
    kp, kx = jax.random.split(key)
    params = init_params(kp, obs_dim_per_task, embed_dim)
    task_obs = jax.random.normal(kx, (batch, num_tasks, obs_dim_per_task), jnp.float32)

    # Default path (single tile for this tiny problem).
    out = task_encoder_forward(task_obs, params)
    out = jax.block_until_ready(out)
    ref = reference_forward(task_obs, params)
    assert out.shape == (batch, num_tasks, embed_dim)
    assert jnp.allclose(out, ref, atol=1e-4, rtol=1e-4), "mismatch vs reference"

    # Exercise the multi-step row grid (tile_rows=8 -> grid of 2) and the
    # padded ragged-row path (rows=15 pads to 16, tail sliced off).
    out_tiled = jax.block_until_ready(task_encoder_forward(task_obs, params, tile_rows=8))
    assert jnp.allclose(out_tiled, ref, atol=1e-4, rtol=1e-4), "mismatch (tiled grid)"

    task_obs_ragged = jax.random.normal(kx, (3, 5, obs_dim_per_task), jnp.float32)
    out_ragged = jax.block_until_ready(
        task_encoder_forward(task_obs_ragged, params, tile_rows=8))
    ref_ragged = reference_forward(task_obs_ragged, params)
    assert out_ragged.shape == (3, 5, embed_dim)
    assert jnp.allclose(out_ragged, ref_ragged, atol=1e-4, rtol=1e-4), "mismatch (ragged)"

    print("KERNEL_OK")
</pallas_src>

<mosaic_0001>
module attributes {stable_mosaic.version = 11 : i64} {
  func.func @task_encoder_kernel(%arg0: i32, %arg1: memref<16x16xf32, #tpu.memory_space<vmem>>, %arg2: memref<16x16xf32, #tpu.memory_space<vmem>>, %arg3: memref<1x16xf32, #tpu.memory_space<vmem>>, %arg4: memref<16x32xf32, #tpu.memory_space<vmem>>, %arg5: memref<1x32xf32, #tpu.memory_space<vmem>>, %arg6: memref<1x32xf32, #tpu.memory_space<vmem>>, %arg7: memref<1x32xf32, #tpu.memory_space<vmem>>, %arg8: memref<16x32xf32, #tpu.memory_space<vmem>>) attributes {dimension_semantics = [#tpu.dimension_semantics<parallel>], iteration_bounds = array<i64: 1>, scalar_prefetch = 0 : i64, scratch_operands = 0 : i64, tpu.core_type = #tpu.core_type<tc>, window_params = [{transform_indices = @transform_0, window_bounds = array<i64: 16, 16>}, {pipeline_mode = #tpu.pipeline_mode<synchronous>, transform_indices = @transform_1, window_bounds = array<i64: 16, 16>}, {pipeline_mode = #tpu.pipeline_mode<synchronous>, transform_indices = @transform_2, window_bounds = array<i64: 1, 16>}, {pipeline_mode = #tpu.pipeline_mode<synchronous>, transform_indices = @transform_3, window_bounds = array<i64: 16, 32>}, {pipeline_mode = #tpu.pipeline_mode<synchronous>, transform_indices = @transform_4, window_bounds = array<i64: 1, 32>}, {pipeline_mode = #tpu.pipeline_mode<synchronous>, transform_indices = @transform_5, window_bounds = array<i64: 1, 32>}, {pipeline_mode = #tpu.pipeline_mode<synchronous>, transform_indices = @transform_6, window_bounds = array<i64: 1, 32>}, {transform_indices = @transform_7, window_bounds = array<i64: 16, 32>}]} {
    %c0 = arith.constant 0 : index
    %c0_0 = arith.constant 0 : index
    %0 = vector.load %arg1[%c0, %c0_0] : memref<16x16xf32, #tpu.memory_space<vmem>>, vector<16x16xf32>
    %c0_1 = arith.constant 0 : index
    %c0_2 = arith.constant 0 : index
    %1 = vector.load %arg2[%c0_1, %c0_2] : memref<16x16xf32, #tpu.memory_space<vmem>>, vector<16x16xf32>
    %cst = arith.constant dense<0.000000e+00> : vector<16x16xf32>
    %2 = tpu.matmul %0, %1, %cst {dimension_numbers = #tpu.dot_dimension_numbers<[1], [0], [0], [1], [0, 0, 1, 1], [], []>} : vector<16x16xf32>, vector<16x16xf32>, vector<16x16xf32> -> vector<16x16xf32>
    %c0_3 = arith.constant 0 : index
    %c0_4 = arith.constant 0 : index
    %3 = vector.load %arg3[%c0_3, %c0_4] : memref<1x16xf32, #tpu.memory_space<vmem>>, vector<1x16xf32>
    %4 = vector.broadcast %3 : vector<1x16xf32> to vector<16x16xf32>
    %5 = arith.addf %2, %4 : vector<16x16xf32>
    %cst_5 = arith.constant 0.000000e+00 : f32
    %6 = vector.broadcast %cst_5 : f32 to vector<16x16xf32>
    %7 = arith.maximumf %5, %6 : vector<16x16xf32>
    %c0_6 = arith.constant 0 : index
    %c0_7 = arith.constant 0 : index
    %8 = vector.load %arg4[%c0_6, %c0_7] : memref<16x32xf32, #tpu.memory_space<vmem>>, vector<16x32xf32>
    %cst_8 = arith.constant dense<0.000000e+00> : vector<16x32xf32>
    %9 = tpu.matmul %7, %8, %cst_8 {dimension_numbers = #tpu.dot_dimension_numbers<[1], [0], [0], [1], [0, 0, 1, 1], [], []>} : vector<16x16xf32>, vector<16x32xf32>, vector<16x32xf32> -> vector<16x32xf32>
    %c0_9 = arith.constant 0 : index
    %c0_10 = arith.constant 0 : index
    %10 = vector.load %arg5[%c0_9, %c0_10] : memref<1x32xf32, #tpu.memory_space<vmem>>, vector<1x32xf32>
    %11 = vector.broadcast %10 : vector<1x32xf32> to vector<16x32xf32>
    %12 = arith.addf %9, %11 : vector<16x32xf32>
    %cst_11 = arith.constant dense<0.000000e+00> : vector<16xf32>
    %13 = vector.multi_reduction <add>, %12, %cst_11 [1] : vector<16x32xf32> to vector<16xf32>
    %14 = vector.shape_cast %13 : vector<16xf32> to vector<16x1xf32>
    %cst_12 = arith.constant 3.200000e+01 : f32
    %15 = vector.broadcast %cst_12 : f32 to vector<16x1xf32>
    %16 = arith.divf %14, %15 : vector<16x1xf32>
    %17 = vector.broadcast %16 : vector<16x1xf32> to vector<16x32xf32>
    %18 = arith.subf %12, %17 : vector<16x32xf32>
    %19 = arith.mulf %18, %18 : vector<16x32xf32>
    %cst_13 = arith.constant dense<0.000000e+00> : vector<16xf32>
    %20 = vector.multi_reduction <add>, %19, %cst_13 [1] : vector<16x32xf32> to vector<16xf32>
    %21 = vector.shape_cast %20 : vector<16xf32> to vector<16x1xf32>
    %cst_14 = arith.constant 3.200000e+01 : f32
    %22 = vector.broadcast %cst_14 : f32 to vector<16x1xf32>
    %23 = arith.divf %21, %22 : vector<16x1xf32>
    %cst_15 = arith.constant 9.99999974E-6 : f32
    %24 = vector.broadcast %cst_15 : f32 to vector<16x1xf32>
    %25 = arith.addf %23, %24 : vector<16x1xf32>
    %26 = math.rsqrt %25 : vector<16x1xf32>
    %27 = vector.broadcast %26 : vector<16x1xf32> to vector<16x32xf32>
    %28 = arith.mulf %18, %27 : vector<16x32xf32>
    %c0_16 = arith.constant 0 : index
    %c0_17 = arith.constant 0 : index
    %29 = vector.load %arg6[%c0_16, %c0_17] : memref<1x32xf32, #tpu.memory_space<vmem>>, vector<1x32xf32>
    %30 = vector.broadcast %29 : vector<1x32xf32> to vector<16x32xf32>
    %31 = arith.mulf %28, %30 : vector<16x32xf32>
    %c0_18 = arith.constant 0 : index
    %c0_19 = arith.constant 0 : index
    %32 = vector.load %arg7[%c0_18, %c0_19] : memref<1x32xf32, #tpu.memory_space<vmem>>, vector<1x32xf32>
    %33 = vector.broadcast %32 : vector<1x32xf32> to vector<16x32xf32>
    %34 = arith.addf %31, %33 : vector<16x32xf32>
    %c0_20 = arith.constant 0 : index
    %c0_21 = arith.constant 0 : index
    %35 = vector.load %arg8[%c0_20, %c0_21] : memref<16x32xf32, #tpu.memory_space<vmem>>, vector<16x32xf32>
    tpu.vector_store %arg8[%c0_20, %c0_21], %34 {strides = array<i32>} : memref<16x32xf32, #tpu.memory_space<vmem>>, vector<16x32xf32>,
    return
  }
  func.func @transform_0(%arg0: i32) -> (i32, i32) {
    %c0_i32 = arith.constant 0 : i32
    %c0_i32_0 = arith.constant 0 : i32
    return %arg0, %c0_i32 : i32, i32
  }
  func.func @transform_1(%arg0: i32) -> (i32, i32) {
    %c0_i32 = arith.constant 0 : i32
    %c0_i32_0 = arith.constant 0 : i32
    %c0_i32_1 = arith.constant 0 : i32
    return %c0_i32, %c0_i32_0 : i32, i32
  }
  func.func @transform_2(%arg0: i32) -> (i32, i32) {
    %c0_i32 = arith.constant 0 : i32
    %c0_i32_0 = arith.constant 0 : i32
    %c0_i32_1 = arith.constant 0 : i32
    return %c0_i32, %c0_i32_0 : i32, i32
  }
  func.func @transform_3(%arg0: i32) -> (i32, i32) {
    %c0_i32 = arith.constant 0 : i32
    %c0_i32_0 = arith.constant 0 : i32
    %c0_i32_1 = arith.constant 0 : i32
    return %c0_i32, %c0_i32_0 : i32, i32
  }
  func.func @transform_4(%arg0: i32) -> (i32, i32) {
    %c0_i32 = arith.constant 0 : i32
    %c0_i32_0 = arith.constant 0 : i32
    %c0_i32_1 = arith.constant 0 : i32
    return %c0_i32, %c0_i32_0 : i32, i32
  }
  func.func @transform_5(%arg0: i32) -> (i32, i32) {
    %c0_i32 = arith.constant 0 : i32
    %c0_i32_0 = arith.constant 0 : i32
    %c0_i32_1 = arith.constant 0 : i32
    return %c0_i32, %c0_i32_0 : i32, i32
  }
  func.func @transform_6(%arg0: i32) -> (i32, i32) {
    %c0_i32 = arith.constant 0 : i32
    %c0_i32_0 = arith.constant 0 : i32
    %c0_i32_1 = arith.constant 0 : i32
    return %c0_i32, %c0_i32_0 : i32, i32
  }
  func.func @transform_7(%arg0: i32) -> (i32, i32) {
    %c0_i32 = arith.constant 0 : i32
    %c0_i32_0 = arith.constant 0 : i32
    return %arg0, %c0_i32 : i32, i32
  }
}

</mosaic_0001>

<llo_original>
// kernel: tpu_custom_call.1
$region0: #{tpu_custom_call.1}
  #allocation0 [shape = 'u32[]', space=smem, size = 0x4, offset = 0x4, fixed_abs, tag = 'smem constant byte address 0x4 - core index']
  #allocation1 [shape = 'u32[144,128]{1,0:T(1,128)}', space=vmem, size = 0x12000, scoped, tag = 'internal scratch']
  %s0 = inlined_call_operand.hbm [shape: f32[16,16], index: 0, kind: input, shape index: {}]
  %s1 = inlined_call_operand.hbm [shape: f32[16,16], index: 1, kind: input, shape index: {}]
  %s2 = inlined_call_operand.vmem [shape: f32[1,16], index: 2, kind: input, shape index: {}]
  %s3 = inlined_call_operand.hbm [shape: f32[16,32], index: 3, kind: input, shape index: {}]
  %s4 = inlined_call_operand.vmem [shape: f32[1,32], index: 4, kind: input, shape index: {}]
  %s5 = inlined_call_operand.vmem [shape: f32[1,32], index: 5, kind: input, shape index: {}]
  %s6 = inlined_call_operand.vmem [shape: f32[1,32], index: 6, kind: input, shape index: {}]
  %s7 = inlined_call_operand.hbm [shape: f32[16,32], index: 7, kind: output, shape index: {}]
  %s8 = sld [smem:[#allocation0]]
  $region50: #{tpu_custom_call.1} parent=0
    _
  %s10 = ssub.s32 1, %s8
  %s11 = scalar_select 0, %s10, %s8
  $region1: #{tpu_custom_call.1} parent=0
    #allocation2 [shape = 'u8[8192]{0}', space=vmem, size = 0x2000, scoped, tag = 'input window, operand 0, single buffered']
    #allocation3 [shape = 's32[1]{0}', space=sflag, size = 0x4, scoped, tag = 'scoped memory for tpu_custom_call.1']
    #allocation4 [shape = 's32[1]{0}', space=sflag, size = 0x4, scoped, tag = 'scoped memory for tpu_custom_call.1']
    #allocation5 [shape = 'u8[8192]{0}', space=vmem, size = 0x2000, scoped, tag = 'input window, operand 1, single buffered']
    #allocation6 [shape = 's32[1]{0}', space=sflag, size = 0x4, scoped, tag = 'scoped memory for tpu_custom_call.1']
    #allocation7 [shape = 'u8[8192]{0}', space=vmem, size = 0x2000, scoped, tag = 'input window, operand 3, single buffered']
    #allocation8 [shape = 'u8[8192]{0}', space=vmem, size = 0x2000, scoped, tag = 'output window, operand 0, single buffered']
    %12 = vsyncpa [#allocation3], 0
    %13 = vsyncpa [#allocation6], 0
    %14 = vsyncpa [#allocation4], 0
    // Predicated region
    $region2: #{tpu_custom_call.1} parent=1 // pred_check
      _
    $region3: #{tpu_custom_call.1} parent=1 // pred_check_branch
      %16 = sbr.rel (0) target = $region5
    $region4: #{tpu_custom_call.1} parent=1 // pred_region
      %s18 = ssub.s32 256, 256
      %19 = vsyncadd [#allocation3], %s18
      %s20 = sshll.u32 [#allocation2], 4
      %s21 = int_to_ptr.vmem [resolvable:$true] %s20
      %26 = dma.hbm_to_vmem [thread:$0]  %s0, 256, %s21, [#allocation3], 128, 128, 8
    $region5: #{tpu_custom_call.1} parent=1 // pred_fallthru
      _
    // Predicated region
    $region6: #{tpu_custom_call.1} parent=1 // pred_check
      _
    $region7: #{tpu_custom_call.1} parent=1 // pred_check_branch
      %28 = sbr.rel (0) target = $region9
    $region8: #{tpu_custom_call.1} parent=1 // pred_region
      %s30 = ssub.s32 256, 256
      %31 = vsyncadd [#allocation6], %s30
      %s32 = sshll.u32 [#allocation5], 4
      %s33 = int_to_ptr.vmem [resolvable:$true] %s32
      %38 = dma.hbm_to_vmem [thread:$0]  %s1, 256, %s33, [#allocation6], 128, 128, 8
    $region9: #{tpu_custom_call.1} parent=1 // pred_fallthru
      _
    // Predicated region
    $region10: #{tpu_custom_call.1} parent=1 // pred_check
      _
    $region11: #{tpu_custom_call.1} parent=1 // pred_check_branch
      %40 = sbr.rel (0) target = $region13
    $region12: #{tpu_custom_call.1} parent=1 // pred_region
      _
    $region13: #{tpu_custom_call.1} parent=1 // pred_fallthru
      _
    // Predicated region
    $region14: #{tpu_custom_call.1} parent=1 // pred_check
      _
    $region15: #{tpu_custom_call.1} parent=1 // pred_check_branch
      %42 = sbr.rel (0) target = $region17
    $region16: #{tpu_custom_call.1} parent=1 // pred_region
      %s44 = ssub.s32 256, 256
      %45 = vsyncadd [#allocation6], %s44
      %s46 = sshll.u32 [#allocation7], 4
      %s47 = int_to_ptr.vmem [resolvable:$true] %s46
      %52 = dma.hbm_to_vmem [thread:$0]  %s3, 256, %s47, [#allocation6], 128, 128, 8
    $region17: #{tpu_custom_call.1} parent=1 // pred_fallthru
      _
    // Predicated region
    $region18: #{tpu_custom_call.1} parent=1 // pred_check
      _
    $region19: #{tpu_custom_call.1} parent=1 // pred_check_branch
      %54 = sbr.rel (0) target = $region21
    $region20: #{tpu_custom_call.1} parent=1 // pred_region
      _
    $region21: #{tpu_custom_call.1} parent=1 // pred_fallthru
      _
    // Predicated region
    $region22: #{tpu_custom_call.1} parent=1 // pred_check
      _
    $region23: #{tpu_custom_call.1} parent=1 // pred_check_branch
      %56 = sbr.rel (0) target = $region25
    $region24: #{tpu_custom_call.1} parent=1 // pred_region
      _
    $region25: #{tpu_custom_call.1} parent=1 // pred_fallthru
      _
    // Predicated region
    $region26: #{tpu_custom_call.1} parent=1 // pred_check
      _
    $region27: #{tpu_custom_call.1} parent=1 // pred_check_branch
      %58 = sbr.rel (0) target = $region29
    $region28: #{tpu_custom_call.1} parent=1 // pred_region
      _
    $region29: #{tpu_custom_call.1} parent=1 // pred_fallthru
      _
    // Predicated region
    $region30: #{tpu_custom_call.1} parent=1 // pred_check
      _
    $region31: #{tpu_custom_call.1} parent=1 // pred_check_branch
      %60 = sbr.rel (0) target = $region33
    $region32: #{tpu_custom_call.1} parent=1 // pred_region
      %61 = dma.done [#allocation3], 256
    $region33: #{tpu_custom_call.1} parent=1 // pred_fallthru
      _
    // Predicated region
    $region34: #{tpu_custom_call.1} parent=1 // pred_check
      _
    $region35: #{tpu_custom_call.1} parent=1 // pred_check_branch
      %63 = sbr.rel (0) target = $region37
    $region36: #{tpu_custom_call.1} parent=1 // pred_region
      %64 = dma.done [#allocation6], 256
    $region37: #{tpu_custom_call.1} parent=1 // pred_fallthru
      _
    // Predicated region
    $region38: #{tpu_custom_call.1} parent=1 // pred_check
      _
    $region39: #{tpu_custom_call.1} parent=1 // pred_check_branch
      %66 = sbr.rel (0) target = $region41
    $region40: #{tpu_custom_call.1} parent=1 // pred_region
      %67 = dma.done [#allocation6], 256
    $region41: #{tpu_custom_call.1} parent=1 // pred_fallthru
      _
    %v68 = vld [vmem:[#allocation2] sm:$0xff]
    %v69 = vld [vmem:[#allocation2 + $0x8] sm:$0xff]
    %v70 = vld [vmem:[#allocation5] sm:$0xff]
    %v71 = vld [vmem:[#allocation5 + $0x8] sm:$0xff]
    %v72 = vld [vmem:[%s2] sm:$0x1]
    %v74 = vlaneseq
    %v75 = vshrl.u32 %v74, 7
    %v76 = vsub.s32 0, %v75
    %v77 = vrot.slane %v72, %v76
    %vm79 = vcmask 130048
    %v81 = vsel %vm79, %v68, 0
    %v84 = vsel %vm79, %v69, 0
    %86 = vmatprep.subr.mxu0 0.0
    %87 = vmatpush1.msra.mxu0 %v70
    %88 = vmatprep.subr.mxu0 0.0
    %89 = vmatpush1.msra.mxu0 %v71
    %90 = vmatprep.subr.mxu0 0.0
    %91 = vmatpush1.msra.mxu0 0.0
    %92 = vmatprep.subr.mxu0 0.0
    %93 = vmatpush1.msra.mxu0 0.0
    %94 = vmatprep.subr.mxu0 0.0
    %95 = vmatpush1.msra.mxu0 0.0
    %96 = vmatprep.subr.mxu0 0.0
    %97 = vmatpush1.msra.mxu0 0.0
    %98 = vmatprep.subr.mxu0 0.0
    %99 = vmatpush1.msra.mxu0 0.0
    %100 = vmatprep.subr.mxu0 0.0
    %101 = vmatpush1.msra.mxu0 0.0
    %102 = vmatprep.subr.mxu0 0.0
    %103 = vmatpush1.msra.mxu0 0.0
    %104 = vmatprep.subr.mxu0 0.0
    %105 = vmatpush1.msra.mxu0 0.0
    %106 = vmatprep.subr.mxu0 0.0
    %107 = vmatpush1.msra.mxu0 0.0
    %108 = vmatprep.subr.mxu0 0.0
    %109 = vmatpush1.msra.mxu0 0.0
    %110 = vmatprep.subr.mxu0 0.0
    %111 = vmatpush1.msra.mxu0 0.0
    %112 = vmatprep.subr.mxu0 0.0
    %113 = vmatpush1.msra.mxu0 0.0
    %114 = vmatprep.subr.mxu0 0.0
    %115 = vmatpush1.msra.mxu0 0.0
    %116 = vmatprep.subr.mxu0 0.0
    %117 = vmatpush1.msra.mxu0 0.0
    %118 = vmatprep.subr.mxu0 0.0
    %119 = vmatpush1.msra.mxu0 0.0
    %120 = vmatprep.subr.mxu0 0.0
    %121 = vmatpush1.msra.mxu0 0.0
    %122 = vmatprep.subr.mxu0 0.0
    %123 = vmatpush1.msra.mxu0 0.0
    %124 = vmatprep.subr.mxu0 0.0
    %125 = vmatpush1.msra.mxu0 0.0
    %126 = vmatprep.subr.mxu0 0.0
    %127 = vmatpush1.msra.mxu0 0.0
    %128 = vmatprep.subr.mxu0 0.0
    %129 = vmatpush1.msra.mxu0 0.0
    %130 = vmatprep.subr.mxu0 0.0
    %131 = vmatpush1.msra.mxu0 0.0
    %132 = vmatprep.subr.mxu0 0.0
    %133 = vmatpush1.msra.mxu0 0.0
    %134 = vmatprep.subr.mxu0 0.0
    %135 = vmatpush1.msra.mxu0 0.0
    %136 = vmatprep.subr.mxu0 0.0
    %137 = vmatpush1.msra.mxu0 0.0
    %138 = vmatprep.subr.mxu0 0.0
    %139 = vmatpush1.msra.mxu0 0.0
    %140 = vmatprep.subr.mxu0 0.0
    %141 = vmatpush1.msra.mxu0 0.0
    %142 = vmatprep.subr.mxu0 0.0
    %143 = vmatpush1.msra.mxu0 0.0
    %144 = vmatprep.subr.mxu0 0.0
    %145 = vmatpush1.msra.mxu0 0.0
    %146 = vmatprep.subr.mxu0 0.0
    %147 = vmatpush1.msra.mxu0 0.0
    %148 = vmatprep.subr.mxu0 0.0
    %149 = vmatpush1.msra.mxu0 0.0
    %150 = vmatprep.mubr.f32.mxu0 0.0
    %151 = vmatmul.mubr.f32.gmra.mrb[0].mxu0 %v81
    %v152 = vpop.f32.mrb[0].mxu0
    %v153 = vadd.f32 %v77, %v152
    %v154 = vpop.f32.mrb[0].mxu0
    %155 = vmatprep.mubr.f32.mxu0 0.0
    %156 = vmatmul.mubr.f32.gmra.mrb[0].mxu0 %v84
    %v157 = vpop.f32.mrb[0].mxu0
    %v158 = vadd.f32 %v77, %v157
    %v159 = vpop.f32.mrb[0].mxu0
    %160 = vdwg.mxu0
    %v161 = vmax.f32 %v153, 0.0
    %v162 = vmax.f32 %v158, 0.0
    %v163 = vld [vmem:[#allocation7] sm:$0xff]
    %v164 = vld [vmem:[#allocation7 + $0x8] sm:$0xff]
    %v165 = vld [vmem:[%s4] sm:$0x1]
    %v167 = vlaneseq
    %v168 = vshrl.u32 %v167, 7
    %v169 = vsub.s32 0, %v168
    %v170 = vrot.slane %v165, %v169
    %v173 = vsel %vm79, %v161, 0
    %v176 = vsel %vm79, %v162, 0
    %178 = vmatprep.subr.mxu0 0.0
    %179 = vmatpush1.msra.mxu0 %v163
    %180 = vmatprep.subr.mxu0 0.0
    %181 = vmatpush1.msra.mxu0 %v164
    %182 = vmatprep.subr.mxu0 0.0
    %183 = vmatpush1.msra.mxu0 0.0
    %184 = vmatprep.subr.mxu0 0.0
    %185 = vmatpush1.msra.mxu0 0.0
    %186 = vmatprep.subr.mxu0 0.0
    %187 = vmatpush1.msra.mxu0 0.0
    %188 = vmatprep.subr.mxu0 0.0
    %189 = vmatpush1.msra.mxu0 0.0
    %190 = vmatprep.subr.mxu0 0.0
    %191 = vmatpush1.msra.mxu0 0.0
    %192 = vmatprep.subr.mxu0 0.0
    %193 = vmatpush1.msra.mxu0 0.0
    %194 = vmatprep.subr.mxu0 0.0
    %195 = vmatpush1.msra.mxu0 0.0
    %196 = vmatprep.subr.mxu0 0.0
    %197 = vmatpush1.msra.mxu0 0.0
    %198 = vmatprep.subr.mxu0 0.0
    %199 = vmatpush1.msra.mxu0 0.0
    %200 = vmatprep.subr.mxu0 0.0
    %201 = vmatpush1.msra.mxu0 0.0
    %202 = vmatprep.subr.mxu0 0.0
    %203 = vmatpush1.msra.mxu0 0.0
    %204 = vmatprep.subr.mxu0 0.0
    %205 = vmatpush1.msra.mxu0 0.0
    %206 = vmatprep.subr.mxu0 0.0
    %207 = vmatpush1.msra.mxu0 0.0
    %208 = vmatprep.subr.mxu0 0.0
    %209 = vmatpush1.msra.mxu0 0.0
    %210 = vmatprep.subr.mxu0 0.0
    %211 = vmatpush1.msra.mxu0 0.0
    %212 = vmatprep.subr.mxu0 0.0
    %213 = vmatpush1.msra.mxu0 0.0
    %214 = vmatprep.subr.mxu0 0.0
    %215 = vmatpush1.msra.mxu0 0.0
    %216 = vmatprep.subr.mxu0 0.0
    %217 = vmatpush1.msra.mxu0 0.0
    %218 = vmatprep.subr.mxu0 0.0
    %219 = vmatpush1.msra.mxu0 0.0
    %220 = vmatprep.subr.mxu0 0.0
    %221 = vmatpush1.msra.mxu0 0.0
    %222 = vmatprep.subr.mxu0 0.0
    %223 = vmatpush1.msra.mxu0 0.0
    %224 = vmatprep.subr.mxu0 0.0
    %225 = vmatpush1.msra.mxu0 0.0
    %226 = vmatprep.subr.mxu0 0.0
    %227 = vmatpush1.msra.mxu0 0.0
    %228 = vmatprep.subr.mxu0 0.0
    %229 = vmatpush1.msra.mxu0 0.0
    %230 = vmatprep.subr.mxu0 0.0
    %231 = vmatpush1.msra.mxu0 0.0
    %232 = vmatprep.subr.mxu0 0.0
    %233 = vmatpush1.msra.mxu0 0.0
    %234 = vmatprep.subr.mxu0 0.0
    %235 = vmatpush1.msra.mxu0 0.0
    %236 = vmatprep.subr.mxu0 0.0
    %237 = vmatpush1.msra.mxu0 0.0
    %238 = vmatprep.subr.mxu0 0.0
    %239 = vmatpush1.msra.mxu0 0.0
    %240 = vmatprep.subr.mxu0 0.0
    %241 = vmatpush1.msra.mxu0 0.0
    %242 = vmatprep.mubr.f32.mxu0 0.0
    %243 = vmatmul.mubr.f32.gmra.mrb[0].mxu0 %v173
    %v244 = vpop.f32.mrb[0].mxu0
    %v245 = vadd.f32 %v170, %v244
    %v246 = vpop.f32.mrb[0].mxu0
    %247 = vmatprep.mubr.f32.mxu0 0.0
    %248 = vmatmul.mubr.f32.gmra.mrb[0].mxu0 %v176
    %v249 = vpop.f32.mrb[0].mxu0
    %v250 = vadd.f32 %v170, %v249
    %v251 = vpop.f32.mrb[0].mxu0
    %252 = vdwg.mxu0
    %vm253 = vcmask 261120
    %v254 = vsel %vm253, %v245, 0.0
    %255 = vadd.xlane.f32.xlu0 %v254
    %v256 = vpop.xlane.xlu0 %255
    %v257 = vsel %vm253, %v250, 0.0
    %258 = vadd.xlane.f32.xlu0 %v257
    %v259 = vpop.xlane.xlu0 %258
    %v260 = vrcp.pop 32.0
    %v261 = vmul.f32 %v256, %v260
    %v262 = vmul.f32 %v259, %v260
    %v263 = vsub.f32 %v245, %v261
    %v264 = vsub.f32 %v250, %v262
    %v265 = vmul.f32 %v263, %v263
    %v266 = vmul.f32 %v264, %v264
    %v267 = vsel %vm253, %v265, 0.0
    %268 = vadd.xlane.f32.xlu0 %v267
    %v269 = vpop.xlane.xlu0 %268
    %v270 = vsel %vm253, %v266, 0.0
    %271 = vadd.xlane.f32.xlu0 %v270
    %v272 = vpop.xlane.xlu0 %271
    %v273 = vmul.f32 %v269, %v260
    %v274 = vmul.f32 %v272, %v260
    %v275 = vadd.f32 %v273, 1e-05
    %v276 = vadd.f32 %v274, 1e-05
    %v277 = vrsqrt.pop %v275
    %v278 = vrsqrt.pop %v276
    %v279 = vmul.f32 %v263, %v277
    %v280 = vmul.f32 %v264, %v278
    %v281 = vld [vmem:[%s5] sm:$0x1]
    %v283 = vlaneseq
    %v284 = vshrl.u32 %v283, 7
    %v285 = vsub.s32 0, %v284
    %v286 = vrot.slane %v281, %v285
    %v288 = vmul.f32 %v279, %v286
    %v289 = vmul.f32 %v280, %v286
    %v290 = vld [vmem:[%s6] sm:$0x1]
    %v292 = vlaneseq
    %v293 = vshrl.u32 %v292, 7
    %v294 = vsub.s32 0, %v293
    %v295 = vrot.slane %v290, %v294
    %v297 = vadd.f32 %v288, %v295
    %v298 = vadd.f32 %v289, %v295
    %299 = vst.msk [vmem:[#allocation8] sm:$0xff] %vm253, %v297
    %300 = vst.msk [vmem:[#allocation8 + $0x8] sm:$0xff] %vm253, %v298
    // Predicated region
    $region42: #{tpu_custom_call.1} parent=1 // pred_check
      _
    $region43: #{tpu_custom_call.1} parent=1 // pred_check_branch
      %302 = sbr.rel (0) target = $region45
    $region44: #{tpu_custom_call.1} parent=1 // pred_region
      %s304 = ssub.s32 256, 256
      %305 = vsyncadd [#allocation4], %s304
      %s306 = sshll.u32 [#allocation8], 4
      %s307 = int_to_ptr.vmem [resolvable:$true] %s306
      %312 = dma.vmem_to_hbm [thread:$0]  %s307, 256, %s7, [#allocation4], 128, 128, 8
    $region45: #{tpu_custom_call.1} parent=1 // pred_fallthru
      _
    // Predicated region
    $region46: #{tpu_custom_call.1} parent=1 // pred_check
      _
    $region47: #{tpu_custom_call.1} parent=1 // pred_check_branch
      %314 = sbr.rel (0) target = $region49
    $region48: #{tpu_custom_call.1} parent=1 // pred_region
      %315 = dma.done [#allocation4], 256
    $region49: #{tpu_custom_call.1} parent=1 // pred_fallthru
      _
    %316 = vsyncpa [#allocation3], 1
    %317 = vsyncpa [#allocation6], 1
    %318 = vsyncpa [#allocation4], 1

</llo_original>
